<compile_context>
chip_gen: v5e
topology: v5e:2x2
jax: 0.10.0
libtpu: 0.0.40
codegen_flags: <defaults>
</compile_context>

<pallas_src>
import math
import functools

import jax
import jax.numpy as jnp
from jax.experimental import pallas as pl
from jax.experimental.pallas import tpu as pltpu


def _self_attn_kernel(x_ref, mask_ref, o_ref, *, num_heads, head_dim, scale,
                      compute_dtype):
    # x_ref:    (Bt, S, H)     batch-row block of hidden states (Q = K = V source)
    # mask_ref: (Bt, 1, 1, S)  additive attention mask for these rows
    # o_ref:    (Bt, S, H)     context output block
    bt, seq, _ = x_ref.shape
    nh, d = num_heads, head_dim

    # Load once; single cast to the MXU fast-path dtype (bf16 when callers pass f32).
    x = x_ref[...].astype(compute_dtype)                        # (Bt, S, H)

    # Head-major relayout ONCE per grid step (instead of re-slicing lanes per
    # head / per operand): (Bt, S, H) -> (Bt, NH, S, D) -> (Bt*NH, S, D).
    xh = jnp.stack([x[:, :, h * d:(h + 1) * d] for h in range(nh)], axis=1)
    xh = xh.reshape(bt * nh, seq, d)        # leading-dim merge: layout-free

    # Fold 1/sqrt(D) into Q (Bt*NH*S*D multiplies instead of scaling (S,S) scores).
    q = xh * jnp.asarray(scale, dtype=xh.dtype)

    # Additive mask: cast/broadcast bound ONCE (outside any per-head code).
    m = mask_ref[...].astype(jnp.float32)                       # (Bt, 1, 1, S)
    m = jnp.broadcast_to(m, (bt, nh, 1, seq)).reshape(bt * nh, 1, seq)

    # All heads in one batched score matmul (MXU back-to-back), f32 accumulation,
    # contracting the last dims of both operands (no materialized transpose).
    s = jnp.einsum('bqd,bkd->bqk', q, xh,
                   preferred_element_type=jnp.float32)          # (Bt*NH, S, S) f32
    s = s + m

    # Numerically stable softmax over keys (f32); denominator reciprocal on the EUP.
    s = s - jnp.max(s, axis=-1, keepdims=True)
    p = jnp.exp(s)
    p = p * pl.reciprocal(jnp.sum(p, axis=-1, keepdims=True), approx=True)

    # TODO(synk): attention_probs dropout omitted (nn.Dropout is identity in eval mode).

    # Batched P @ V, f32 accumulation.
    ctx = jnp.einsum('bqk,bkd->bqd', p.astype(compute_dtype), xh,
                     preferred_element_type=jnp.float32)        # (Bt*NH, S, D)
    ctx = ctx.reshape(bt, nh, seq, d).astype(o_ref.dtype)

    # Merge heads straight into the output VMEM tile (no lane-axis concatenate in
    # vregs); the HBM writeback stays a single lane-dense (Bt, S, H) DMA.
    for h in range(nh):
        o_ref[:, :, h * d:(h + 1) * d] = ctx[:, h]


def bert_self_attention(hidden_states, attention_mask, *, num_attention_heads,
                        vmem_budget_bytes=24 * 1024 * 1024):
    """hidden_states: (B, S, H); attention_mask: (B, 1, 1, S) additive mask."""
    B, S, H = hidden_states.shape
    if H % num_attention_heads != 0:
        raise ValueError("hidden size not a multiple of num_attention_heads")
    NH = num_attention_heads
    D = H // NH
    scale = 1.0 / math.sqrt(D)

    in_dt = hidden_states.dtype
    # bf16 operands are the MXU fast path on v5e/v6e/v7x; keep f32 accumulation.
    compute_dtype = jnp.bfloat16 if in_dt == jnp.float32 else in_dt
    in_item = jnp.dtype(in_dt).itemsize
    mask_item = jnp.dtype(attention_mask.dtype).itemsize
    c_item = jnp.dtype(compute_dtype).itemsize

    def footprint(bt):
        io = 2 * (2 * bt * S * H * in_item + bt * S * mask_item)   # double-buffered in/out/mask tiles
        heads = 2 * bt * NH * S * D * c_item                        # head-major x + scaled q
        scores = bt * NH * S * S * (4 + 4 + c_item)                 # scores f32 + exp f32 + probs (compute dtype)
        ctx = bt * NH * S * D * (4 + in_item)                       # ctx f32 + out-dtype copy
        return io + heads + scores + ctx

    # Fewer, fatter grid steps: block as many batch rows per step as comfortably
    # fit under the VMEM budget (whole batch in one step at small shapes).
    bt = 1
    for cand in range(1, B + 1):
        if B % cand == 0 and footprint(cand) <= vmem_budget_bytes:
            bt = cand
    steps = B // bt
    # NOTE: on v7x (2 TensorCores per chip) an even `steps` keeps both cores
    # busy; at steps == 1 the whole problem is a single (tiny) step anyway.

    # Explicit scoped-VMEM limit: 2x estimated footprint, floored at the default
    # 32 MiB and capped at 48 MiB (safe on v7x's 64 MiB physical VMEM).
    vmem_limit = int(min(48 * 1024 * 1024,
                         max(2 * footprint(bt), 32 * 1024 * 1024)))

    cost = pl.CostEstimate(
        flops=4 * B * NH * S * S * D,                              # two matmuls
        transcendentals=B * NH * S * S,                            # exp in softmax
        bytes_accessed=2 * B * S * H * in_item + B * S * mask_item,
    )

    kernel = functools.partial(_self_attn_kernel,
                               num_heads=NH, head_dim=D, scale=scale,
                               compute_dtype=compute_dtype)

    return pl.pallas_call(
        kernel,
        out_shape=jax.ShapeDtypeStruct((B, S, H), in_dt),
        grid=(steps,),
        in_specs=[
            # a block of Bt full (S, H) batch rows per step; heads handled in-kernel
            pl.BlockSpec((bt, S, H), lambda b: (b, 0, 0)),
            # additive mask for these rows (shared across heads/queries)
            pl.BlockSpec((bt, 1, 1, S), lambda b: (b, 0, 0, 0)),
        ],
        out_specs=pl.BlockSpec((bt, S, H), lambda b: (b, 0, 0)),
        compiler_params=pltpu.CompilerParams(
            dimension_semantics=("parallel",),
            vmem_limit_bytes=vmem_limit),
        cost_estimate=cost,
    )(hidden_states, attention_mask)


def _reference(hidden_states, attention_mask, num_attention_heads):
    B, S, H = hidden_states.shape
    D = H // num_attention_heads
    x = hidden_states.reshape(B, S, num_attention_heads, D).transpose(0, 2, 1, 3)
    scores = jnp.einsum("bhqd,bhkd->bhqk", x, x) / math.sqrt(D)
    scores = scores + attention_mask            # (B,1,1,S) broadcasts over heads/queries
    probs = jax.nn.softmax(scores, axis=-1)
    ctx = jnp.einsum("bhqk,bhkd->bhqd", probs, x)
    return ctx.transpose(0, 2, 1, 3).reshape(B, S, H)


if __name__ == "__main__":
    # config: hidden_size=32, num_attention_heads=4 -> head_size=8; seq=8, batch=2
    B, S, H, NH = 2, 8, 32, 4

    key = jax.random.PRNGKey(0)
    k1, k2 = jax.random.split(key)
    hidden_states = jax.random.normal(k1, (B, S, H), dtype=jnp.float32)
    # BERT-style additive mask: 0 where attended, -10000 where masked.
    keep = (jax.random.uniform(k2, (B, 1, 1, S)) > 0.2).astype(jnp.float32)
    attention_mask = (1.0 - keep) * -10000.0

    out = bert_self_attention(hidden_states, attention_mask,
                              num_attention_heads=NH)
    out = jax.block_until_ready(out)

    ref = _reference(hidden_states, attention_mask, NH)
    assert out.shape == (B, S, H)
    # tolerance accounts for bf16 matmul operands (f32 accumulation) and
    # pl.reciprocal(approx=True) in the softmax denominator
    assert jnp.allclose(out, ref, atol=3e-2, rtol=2e-2), float(
        jnp.max(jnp.abs(out - ref)))

    print("KERNEL_OK")
</pallas_src>

<mosaic_0001>
module attributes {stable_mosaic.version = 11 : i64} {
  func.func @_self_attn_kernel(%arg0: i32, %arg1: memref<2x8x32xf32, #tpu.memory_space<vmem>>, %arg2: memref<2x1x1x8xf32, #tpu.memory_space<vmem>>, %arg3: memref<2x8x32xf32, #tpu.memory_space<vmem>>) attributes {dimension_semantics = [#tpu.dimension_semantics<parallel>], iteration_bounds = array<i64: 1>, scalar_prefetch = 0 : i64, scratch_operands = 0 : i64, tpu.core_type = #tpu.core_type<tc>, window_params = [{transform_indices = @transform_0, window_bounds = array<i64: 2, 8, 32>}, {transform_indices = @transform_1, window_bounds = array<i64: 2, 1, 1, 8>}, {transform_indices = @transform_2, window_bounds = array<i64: 2, 8, 32>}]} {
    %c0 = arith.constant 0 : index
    %c0_0 = arith.constant 0 : index
    %c0_1 = arith.constant 0 : index
    %0 = vector.load %arg1[%c0, %c0_0, %c0_1] : memref<2x8x32xf32, #tpu.memory_space<vmem>>, vector<2x8x32xf32>
    %1 = arith.truncf %0 : vector<2x8x32xf32> to vector<2x8x32xbf16>
    %2 = vector.extract_strided_slice %1 {offsets = [0, 0, 0], sizes = [2, 8, 8], strides = [1, 1, 1]} : vector<2x8x32xbf16> to vector<2x8x8xbf16>
    %3 = vector.extract_strided_slice %1 {offsets = [0, 0, 8], sizes = [2, 8, 8], strides = [1, 1, 1]} : vector<2x8x32xbf16> to vector<2x8x8xbf16>
    %4 = vector.extract_strided_slice %1 {offsets = [0, 0, 16], sizes = [2, 8, 8], strides = [1, 1, 1]} : vector<2x8x32xbf16> to vector<2x8x8xbf16>
    %5 = vector.extract_strided_slice %1 {offsets = [0, 0, 24], sizes = [2, 8, 8], strides = [1, 1, 1]} : vector<2x8x32xbf16> to vector<2x8x8xbf16>
    %6 = vector.shape_cast %2 : vector<2x8x8xbf16> to vector<2x1x8x8xbf16>
    %7 = vector.shape_cast %3 : vector<2x8x8xbf16> to vector<2x1x8x8xbf16>
    %8 = vector.shape_cast %4 : vector<2x8x8xbf16> to vector<2x1x8x8xbf16>
    %9 = vector.shape_cast %5 : vector<2x8x8xbf16> to vector<2x1x8x8xbf16>
    %10 = tpu.concatenate %6, %7, %8, %9 in 1 : vector<2x1x8x8xbf16>, vector<2x1x8x8xbf16>, vector<2x1x8x8xbf16>, vector<2x1x8x8xbf16> -> vector<2x4x8x8xbf16>
    %11 = vector.shape_cast %10 : vector<2x4x8x8xbf16> to vector<8x8x8xbf16>
    %cst = arith.constant 3.535160e-01 : bf16
    %12 = vector.broadcast %cst : bf16 to vector<8x8x8xbf16>
    %13 = arith.mulf %11, %12 : vector<8x8x8xbf16>
    %c0_2 = arith.constant 0 : index
    %c0_3 = arith.constant 0 : index
    %c0_4 = arith.constant 0 : index
    %c0_5 = arith.constant 0 : index
    %14 = vector.load %arg2[%c0_2, %c0_3, %c0_4, %c0_5] : memref<2x1x1x8xf32, #tpu.memory_space<vmem>>, vector<2x1x1x8xf32>
    %15 = vector.shape_cast %14 : vector<2x1x1x8xf32> to vector<2x1x1x8xf32>
    %16 = vector.broadcast %15 : vector<2x1x1x8xf32> to vector<2x4x1x8xf32>
    %17 = vector.shape_cast %16 : vector<2x4x1x8xf32> to vector<8x1x8xf32>
    "tpu.trace_start"() <{level = 10 : i32, message = "bqd,bkd->bqk"}> : () -> ()
    %cst_6 = arith.constant dense<0.000000e+00> : vector<8x8x8xf32>
    %18 = tpu.matmul %13, %11, %cst_6 {dimension_numbers = #tpu.dot_dimension_numbers<[2], [2], [1], [1], [0, 0, 0, 1, 1, 1], [0], [0]>} : vector<8x8x8xbf16>, vector<8x8x8xbf16>, vector<8x8x8xf32> -> vector<8x8x8xf32>
    "tpu.trace_stop"() : () -> ()
    %19 = vector.broadcast %17 : vector<8x1x8xf32> to vector<8x8x8xf32>
    %20 = arith.addf %18, %19 : vector<8x8x8xf32>
    %cst_7 = arith.constant dense<0xFF800000> : vector<8x8xf32>
    %21 = vector.multi_reduction <maximumf>, %20, %cst_7 [2] : vector<8x8x8xf32> to vector<8x8xf32>
    %22 = vector.shape_cast %21 : vector<8x8xf32> to vector<8x8x1xf32>
    %23 = vector.broadcast %22 : vector<8x8x1xf32> to vector<8x8x8xf32>
    %24 = arith.subf %20, %23 : vector<8x8x8xf32>
    %25 = math.exp %24 : vector<8x8x8xf32>
    %cst_8 = arith.constant dense<0.000000e+00> : vector<8x8xf32>
    %26 = vector.multi_reduction <add>, %25, %cst_8 [2] : vector<8x8x8xf32> to vector<8x8xf32>
    %27 = vector.shape_cast %26 : vector<8x8xf32> to vector<8x8x1xf32>
    %28 = tpu.reciprocal %27 {approx = true} : vector<8x8x1xf32> -> vector<8x8x1xf32>
    %29 = vector.broadcast %28 : vector<8x8x1xf32> to vector<8x8x8xf32>
    %30 = arith.mulf %25, %29 : vector<8x8x8xf32>
    %31 = arith.truncf %30 : vector<8x8x8xf32> to vector<8x8x8xbf16>
    "tpu.trace_start"() <{level = 10 : i32, message = "bqk,bkd->bqd"}> : () -> ()
    %cst_9 = arith.constant dense<0.000000e+00> : vector<8x8x8xf32>
    %32 = tpu.matmul %31, %11, %cst_9 {dimension_numbers = #tpu.dot_dimension_numbers<[2], [1], [1], [2], [0, 0, 0, 1, 1, 2], [0], [0]>} : vector<8x8x8xbf16>, vector<8x8x8xbf16>, vector<8x8x8xf32> -> vector<8x8x8xf32>
    "tpu.trace_stop"() : () -> ()
    %33 = vector.shape_cast %32 : vector<8x8x8xf32> to vector<2x4x8x8xf32>
    %34 = vector.extract_strided_slice %33 {offsets = [0, 0, 0, 0], sizes = [2, 1, 8, 8], strides = [1, 1, 1, 1]} : vector<2x4x8x8xf32> to vector<2x1x8x8xf32>
    %35 = vector.shape_cast %34 : vector<2x1x8x8xf32> to vector<2x8x8xf32>
    %c0_10 = arith.constant 0 : index
    %c0_11 = arith.constant 0 : index
    %c0_12 = arith.constant 0 : index
    %36 = vector.load %arg3[%c0_10, %c0_11, %c0_12] : memref<2x8x32xf32, #tpu.memory_space<vmem>>, vector<2x8x8xf32>
    tpu.vector_store %arg3[%c0_10, %c0_11, %c0_12], %35 {strides = array<i32>} : memref<2x8x32xf32, #tpu.memory_space<vmem>>, vector<2x8x8xf32>,
    %37 = vector.extract_strided_slice %33 {offsets = [0, 1, 0, 0], sizes = [2, 1, 8, 8], strides = [1, 1, 1, 1]} : vector<2x4x8x8xf32> to vector<2x1x8x8xf32>
    %38 = vector.shape_cast %37 : vector<2x1x8x8xf32> to vector<2x8x8xf32>
    %c0_13 = arith.constant 0 : index
    %c0_14 = arith.constant 0 : index
    %c8 = arith.constant 8 : index
    %39 = vector.load %arg3[%c0_13, %c0_14, %c8] : memref<2x8x32xf32, #tpu.memory_space<vmem>>, vector<2x8x8xf32>
    tpu.vector_store %arg3[%c0_13, %c0_14, %c8], %38 {strides = array<i32>} : memref<2x8x32xf32, #tpu.memory_space<vmem>>, vector<2x8x8xf32>,
    %40 = vector.extract_strided_slice %33 {offsets = [0, 2, 0, 0], sizes = [2, 1, 8, 8], strides = [1, 1, 1, 1]} : vector<2x4x8x8xf32> to vector<2x1x8x8xf32>
    %41 = vector.shape_cast %40 : vector<2x1x8x8xf32> to vector<2x8x8xf32>
    %c0_15 = arith.constant 0 : index
    %c0_16 = arith.constant 0 : index
    %c16 = arith.constant 16 : index
    %42 = vector.load %arg3[%c0_15, %c0_16, %c16] : memref<2x8x32xf32, #tpu.memory_space<vmem>>, vector<2x8x8xf32>
    tpu.vector_store %arg3[%c0_15, %c0_16, %c16], %41 {strides = array<i32>} : memref<2x8x32xf32, #tpu.memory_space<vmem>>, vector<2x8x8xf32>,
    %43 = vector.extract_strided_slice %33 {offsets = [0, 3, 0, 0], sizes = [2, 1, 8, 8], strides = [1, 1, 1, 1]} : vector<2x4x8x8xf32> to vector<2x1x8x8xf32>
    %44 = vector.shape_cast %43 : vector<2x1x8x8xf32> to vector<2x8x8xf32>
    %c0_17 = arith.constant 0 : index
    %c0_18 = arith.constant 0 : index
    %c24 = arith.constant 24 : index
    %45 = vector.load %arg3[%c0_17, %c0_18, %c24] : memref<2x8x32xf32, #tpu.memory_space<vmem>>, vector<2x8x8xf32>
    tpu.vector_store %arg3[%c0_17, %c0_18, %c24], %44 {strides = array<i32>} : memref<2x8x32xf32, #tpu.memory_space<vmem>>, vector<2x8x8xf32>,
    return
  }
  func.func @transform_0(%arg0: i32) -> (i32, i32, i32) {
    %c0_i32 = arith.constant 0 : i32
    %c0_i32_0 = arith.constant 0 : i32
    %c0_i32_1 = arith.constant 0 : i32
    return %arg0, %c0_i32, %c0_i32_0 : i32, i32, i32
  }
  func.func @transform_1(%arg0: i32) -> (i32, i32, i32, i32) {
    %c0_i32 = arith.constant 0 : i32
    %c0_i32_0 = arith.constant 0 : i32
    %c0_i32_1 = arith.constant 0 : i32
    %c0_i32_2 = arith.constant 0 : i32
    return %arg0, %c0_i32, %c0_i32_0, %c0_i32_1 : i32, i32, i32, i32
  }
  func.func @transform_2(%arg0: i32) -> (i32, i32, i32) {
    %c0_i32 = arith.constant 0 : i32
    %c0_i32_0 = arith.constant 0 : i32
    %c0_i32_1 = arith.constant 0 : i32
    return %arg0, %c0_i32, %c0_i32_0 : i32, i32, i32
  }
}

</mosaic_0001>

<llo_original>
// kernel: tpu_custom_call.1
$region0: #{tpu_custom_call.1}
  #allocation0 [shape = 'u32[]', space=smem, size = 0x4, offset = 0x4, fixed_abs, tag = 'smem constant byte address 0x4 - core index']
  #allocation1 [shape = 'u32[72,128]{1,0:T(1,128)}', space=vmem, size = 0x9000, scoped, tag = 'internal scratch']
  %s0 = inlined_call_operand.hbm [shape: f32[2,8,32], index: 0, kind: input, shape index: {}]
  %s1 = inlined_call_operand.hbm [shape: f32[2,1,1,8], index: 1, kind: input, shape index: {}]
  %s2 = inlined_call_operand.hbm [shape: f32[2,8,32], index: 2, kind: output, shape index: {}]
  %s3 = sld [smem:[#allocation0]]
  $region26: #{tpu_custom_call.1} parent=0
    _
  %s5 = ssub.s32 1, %s3
  %s6 = scalar_select 0, %s5, %s3
  $region1: #{tpu_custom_call.1} parent=0
    #allocation2 [shape = 'u8[8192]{0}', space=vmem, size = 0x2000, scoped, tag = 'input window, operand 0, single buffered']
    #allocation3 [shape = 's32[1]{0}', space=sflag, size = 0x4, scoped, tag = 'scoped memory for tpu_custom_call.1']
    #allocation4 [shape = 's32[1]{0}', space=sflag, size = 0x4, scoped, tag = 'scoped memory for tpu_custom_call.1']
    #allocation5 [shape = 'u8[1024]{0}', space=vmem, size = 0x400, scoped, tag = 'input window, operand 1, single buffered']
    #allocation6 [shape = 's32[1]{0}', space=sflag, size = 0x4, scoped, tag = 'scoped memory for tpu_custom_call.1']
    #allocation7 [shape = 'u8[8192]{0}', space=vmem, size = 0x2000, scoped, tag = 'output window, operand 0, single buffered']
    %7 = vsyncpa [#allocation3], 0
    %8 = vsyncpa [#allocation6], 0
    %9 = vsyncpa [#allocation4], 0
    // Predicated region
    $region2: #{tpu_custom_call.1} parent=1 // pred_check
      _
    $region3: #{tpu_custom_call.1} parent=1 // pred_check_branch
      %11 = sbr.rel (0) target = $region5
    $region4: #{tpu_custom_call.1} parent=1 // pred_region
      %13 = vsyncadd [#allocation3], 0
      %s14 = sshll.u32 %s0, 4
      %s15 = int_to_ptr.hbm [resolvable:$true] %s14
      %s16 = sshll.u32 [#allocation2], 4
      %s17 = int_to_ptr.vmem [resolvable:$true] %s16
      %22 = dma.hbm_to_vmem [thread:$0]  %s15, 256, %s17, [#allocation3], 128, 128, 8
    $region5: #{tpu_custom_call.1} parent=1 // pred_fallthru
      _
    // Predicated region
    $region6: #{tpu_custom_call.1} parent=1 // pred_check
      _
    $region7: #{tpu_custom_call.1} parent=1 // pred_check_branch
      %24 = sbr.rel (0) target = $region9
    $region8: #{tpu_custom_call.1} parent=1 // pred_region
      %26 = vsyncadd [#allocation6], 0
      %s27 = sshll.u32 %s1, 4
      %s28 = int_to_ptr.hbm [resolvable:$true] %s27
      %s29 = sshll.u32 [#allocation5], 4
      %s30 = int_to_ptr.vmem [resolvable:$true] %s29
      %35 = dma.hbm_to_vmem [thread:$0]  %s28, 32, %s30, [#allocation6], 16, 16, 1
    $region9: #{tpu_custom_call.1} parent=1 // pred_fallthru
      _
    // Predicated region
    $region10: #{tpu_custom_call.1} parent=1 // pred_check
      _
    $region11: #{tpu_custom_call.1} parent=1 // pred_check_branch
      %37 = sbr.rel (0) target = $region13
    $region12: #{tpu_custom_call.1} parent=1 // pred_region
      %39 = dma.done [#allocation3], 256
    $region13: #{tpu_custom_call.1} parent=1 // pred_fallthru
      _
    // Predicated region
    $region14: #{tpu_custom_call.1} parent=1 // pred_check
      _
    $region15: #{tpu_custom_call.1} parent=1 // pred_check_branch
      %41 = sbr.rel (0) target = $region17
    $region16: #{tpu_custom_call.1} parent=1 // pred_region
      %43 = dma.done [#allocation6], 32
    $region17: #{tpu_custom_call.1} parent=1 // pred_fallthru
      _
    %v45 = vld [vmem:[#allocation2] sm:$0xff]
    %v46 = vld [vmem:[#allocation2 + $0x8] sm:$0xff]
    %v47 = vpack.c.bf16 %v45, %v45
    %v48 = vpack.c.bf16 %v46, %v46
    %51 = vrot.lane.b32.xlu0 %v47, 120
    %v52 = vpop.permute.xlu0 %51
    %53 = vrot.lane.b32.xlu0 %v48, 120
    %v54 = vpop.permute.xlu0 %53
    %57 = vrot.lane.b32.xlu0 %v47, 112
    %v58 = vpop.permute.xlu0 %57
    %59 = vrot.lane.b32.xlu0 %v48, 112
    %v60 = vpop.permute.xlu0 %59
    %63 = vrot.lane.b32.xlu0 %v47, 104
    %v64 = vpop.permute.xlu0 %63
    %65 = vrot.lane.b32.xlu0 %v48, 104
    %v66 = vpop.permute.xlu0 %65
    %v69 = vunpack.c.l.bf16 %v47
    %v70 = vunpack.c.l.bf16 %v52
    %v71 = vunpack.c.l.bf16 %v58
    %v72 = vunpack.c.l.bf16 %v64
    %v73 = vunpack.c.l.bf16 %v48
    %v74 = vunpack.c.l.bf16 %v54
    %v75 = vunpack.c.l.bf16 %v60
    %v76 = vunpack.c.l.bf16 %v66
    %v77 = vmul.f32 %v69, 0.35351563
    %v78 = vmul.f32 %v70, 0.35351563
    %v79 = vmul.f32 %v71, 0.35351563
    %v80 = vmul.f32 %v72, 0.35351563
    %v81 = vmul.f32 %v73, 0.35351563
    %v82 = vmul.f32 %v74, 0.35351563
    %v83 = vmul.f32 %v75, 0.35351563
    %v84 = vmul.f32 %v76, 0.35351563
    %v85 = vpack.c.bf16 %v77, %v77
    %v86 = vpack.c.bf16 %v78, %v78
    %v87 = vpack.c.bf16 %v79, %v79
    %v88 = vpack.c.bf16 %v80, %v80
    %v89 = vpack.c.bf16 %v81, %v81
    %v90 = vpack.c.bf16 %v82, %v82
    %v91 = vpack.c.bf16 %v83, %v83
    %v92 = vpack.c.bf16 %v84, %v84
    %v93 = vld [vmem:[#allocation5] sm:$0x1]
    %v94 = vld [vmem:[#allocation5 + $0x1] sm:$0x1]
    %v97 = vperm.slane %v93, 0
    %v98 = vperm.slane %v94, 0
    %vm101 = vcmask 64512
    %v103 = vsel %vm101, %v85, 0
    %v106 = vsel %vm101, %v47, 0
    %108 = vmatpush.bf16.xpose.msra.mxu0 0
    %109 = vmatpush.bf16.xpose.msra.mxu0 0
    %110 = vmatpush.bf16.xpose.msra.mxu0 0
    %111 = vmatpush.bf16.xpose.msra.mxu0 0
    %112 = vmatpush.bf16.xpose.msra.mxu0 0
    %113 = vmatpush.bf16.xpose.msra.mxu0 0
    %114 = vmatpush.bf16.xpose.msra.mxu0 0
    %115 = vmatpush.bf16.xpose.msra.mxu0 %v106
    %116 = vmatmul.bf16.gmra.mxu0 %v103
    %v117 = vpop.f32.mrf.mxu0
    %v118 = vadd.f32 %v97, %v117
    %v119 = vpop.f32.mrf.mxu0
    %120 = vdwg.mxu0
    %v122 = vsel %vm101, %v86, 0
    %v125 = vsel %vm101, %v52, 0
    %127 = vmatpush.bf16.xpose.msra.mxu0 0
    %128 = vmatpush.bf16.xpose.msra.mxu0 0
    %129 = vmatpush.bf16.xpose.msra.mxu0 0
    %130 = vmatpush.bf16.xpose.msra.mxu0 0
    %131 = vmatpush.bf16.xpose.msra.mxu0 0
    %132 = vmatpush.bf16.xpose.msra.mxu0 0
    %133 = vmatpush.bf16.xpose.msra.mxu0 0
    %134 = vmatpush.bf16.xpose.msra.mxu0 %v125
    %135 = vmatmul.bf16.gmra.mxu0 %v122
    %v136 = vpop.f32.mrf.mxu0
    %v137 = vadd.f32 %v97, %v136
    %v138 = vpop.f32.mrf.mxu0
    %139 = vdwg.mxu0
    %v141 = vsel %vm101, %v87, 0
    %v144 = vsel %vm101, %v58, 0
    %146 = vmatpush.bf16.xpose.msra.mxu0 0
    %147 = vmatpush.bf16.xpose.msra.mxu0 0
    %148 = vmatpush.bf16.xpose.msra.mxu0 0
    %149 = vmatpush.bf16.xpose.msra.mxu0 0
    %150 = vmatpush.bf16.xpose.msra.mxu0 0
    %151 = vmatpush.bf16.xpose.msra.mxu0 0
    %152 = vmatpush.bf16.xpose.msra.mxu0 0
    %153 = vmatpush.bf16.xpose.msra.mxu0 %v144
    %154 = vmatmul.bf16.gmra.mxu0 %v141
    %v155 = vpop.f32.mrf.mxu0
    %v156 = vadd.f32 %v97, %v155
    %v157 = vpop.f32.mrf.mxu0
    %158 = vdwg.mxu0
    %v160 = vsel %vm101, %v88, 0
    %v163 = vsel %vm101, %v64, 0
    %165 = vmatpush.bf16.xpose.msra.mxu0 0
    %166 = vmatpush.bf16.xpose.msra.mxu0 0
    %167 = vmatpush.bf16.xpose.msra.mxu0 0
    %168 = vmatpush.bf16.xpose.msra.mxu0 0
    %169 = vmatpush.bf16.xpose.msra.mxu0 0
    %170 = vmatpush.bf16.xpose.msra.mxu0 0
    %171 = vmatpush.bf16.xpose.msra.mxu0 0
    %172 = vmatpush.bf16.xpose.msra.mxu0 %v163
    %173 = vmatmul.bf16.gmra.mxu0 %v160
    %v174 = vpop.f32.mrf.mxu0
    %v175 = vadd.f32 %v97, %v174
    %v176 = vpop.f32.mrf.mxu0
    %177 = vdwg.mxu0
    %v179 = vsel %vm101, %v89, 0
    %v182 = vsel %vm101, %v48, 0
    %184 = vmatpush.bf16.xpose.msra.mxu0 0
    %185 = vmatpush.bf16.xpose.msra.mxu0 0
    %186 = vmatpush.bf16.xpose.msra.mxu0 0
    %187 = vmatpush.bf16.xpose.msra.mxu0 0
    %188 = vmatpush.bf16.xpose.msra.mxu0 0
    %189 = vmatpush.bf16.xpose.msra.mxu0 0
    %190 = vmatpush.bf16.xpose.msra.mxu0 0
    %191 = vmatpush.bf16.xpose.msra.mxu0 %v182
    %192 = vmatmul.bf16.gmra.mxu0 %v179
    %v193 = vpop.f32.mrf.mxu0
    %v194 = vadd.f32 %v98, %v193
    %v195 = vpop.f32.mrf.mxu0
    %196 = vdwg.mxu0
    %v198 = vsel %vm101, %v90, 0
    %v201 = vsel %vm101, %v54, 0
    %203 = vmatpush.bf16.xpose.msra.mxu0 0
    %204 = vmatpush.bf16.xpose.msra.mxu0 0
    %205 = vmatpush.bf16.xpose.msra.mxu0 0
    %206 = vmatpush.bf16.xpose.msra.mxu0 0
    %207 = vmatpush.bf16.xpose.msra.mxu0 0
    %208 = vmatpush.bf16.xpose.msra.mxu0 0
    %209 = vmatpush.bf16.xpose.msra.mxu0 0
    %210 = vmatpush.bf16.xpose.msra.mxu0 %v201
    %211 = vmatmul.bf16.gmra.mxu0 %v198
    %v212 = vpop.f32.mrf.mxu0
    %v213 = vadd.f32 %v98, %v212
    %v214 = vpop.f32.mrf.mxu0
    %215 = vdwg.mxu0
    %v217 = vsel %vm101, %v91, 0
    %v220 = vsel %vm101, %v60, 0
    %222 = vmatpush.bf16.xpose.msra.mxu0 0
    %223 = vmatpush.bf16.xpose.msra.mxu0 0
    %224 = vmatpush.bf16.xpose.msra.mxu0 0
    %225 = vmatpush.bf16.xpose.msra.mxu0 0
    %226 = vmatpush.bf16.xpose.msra.mxu0 0
    %227 = vmatpush.bf16.xpose.msra.mxu0 0
    %228 = vmatpush.bf16.xpose.msra.mxu0 0
    %229 = vmatpush.bf16.xpose.msra.mxu0 %v220
    %230 = vmatmul.bf16.gmra.mxu0 %v217
    %v231 = vpop.f32.mrf.mxu0
    %v232 = vadd.f32 %v98, %v231
    %v233 = vpop.f32.mrf.mxu0
    %234 = vdwg.mxu0
    %v236 = vsel %vm101, %v92, 0
    %v239 = vsel %vm101, %v66, 0
    %241 = vmatpush.bf16.xpose.msra.mxu0 0
    %242 = vmatpush.bf16.xpose.msra.mxu0 0
    %243 = vmatpush.bf16.xpose.msra.mxu0 0
    %244 = vmatpush.bf16.xpose.msra.mxu0 0
    %245 = vmatpush.bf16.xpose.msra.mxu0 0
    %246 = vmatpush.bf16.xpose.msra.mxu0 0
    %247 = vmatpush.bf16.xpose.msra.mxu0 0
    %248 = vmatpush.bf16.xpose.msra.mxu0 %v239
    %249 = vmatmul.bf16.gmra.mxu0 %v236
    %v250 = vpop.f32.mrf.mxu0
    %v251 = vadd.f32 %v98, %v250
    %v252 = vpop.f32.mrf.mxu0
    %253 = vdwg.mxu0
    %v254 = vsel %vm101, %v118, -inf
    %255 = vmax.xlane.f32.xlu0 %v254
    %v256 = vpop.xlane.xlu0 %255
    %v257 = vsel %vm101, %v137, -inf
    %258 = vmax.xlane.f32.xlu0 %v257
    %v259 = vpop.xlane.xlu0 %258
    %v260 = vsel %vm101, %v156, -inf
    %261 = vmax.xlane.f32.xlu0 %v260
    %v262 = vpop.xlane.xlu0 %261
    %v263 = vsel %vm101, %v175, -inf
    %264 = vmax.xlane.f32.xlu0 %v263
    %v265 = vpop.xlane.xlu0 %264
    %v266 = vsel %vm101, %v194, -inf
    %267 = vmax.xlane.f32.xlu0 %v266
    %v268 = vpop.xlane.xlu0 %267
    %v269 = vsel %vm101, %v213, -inf
    %270 = vmax.xlane.f32.xlu0 %v269
    %v271 = vpop.xlane.xlu0 %270
    %v272 = vsel %vm101, %v232, -inf
    %273 = vmax.xlane.f32.xlu0 %v272
    %v274 = vpop.xlane.xlu0 %273
    %v275 = vsel %vm101, %v251, -inf
    %276 = vmax.xlane.f32.xlu0 %v275
    %v277 = vpop.xlane.xlu0 %276
    %v278 = vsub.f32 %v118, %v256
    %v279 = vsub.f32 %v137, %v259
    %v280 = vsub.f32 %v156, %v262
    %v281 = vsub.f32 %v175, %v265
    %v282 = vsub.f32 %v194, %v268
    %v283 = vsub.f32 %v213, %v271
    %v284 = vsub.f32 %v232, %v274
    %v285 = vsub.f32 %v251, %v277
    %v286 = vmul.f32 %v278, 1.442695
    %v287 = vpow.pop %v286
    %v288 = vmul.f32 %v279, 1.442695
    %v289 = vpow.pop %v288
    %v290 = vmul.f32 %v280, 1.442695
    %v291 = vpow.pop %v290
    %v292 = vmul.f32 %v281, 1.442695
    %v293 = vpow.pop %v292
    %v294 = vmul.f32 %v282, 1.442695
    %v295 = vpow.pop %v294
    %v296 = vmul.f32 %v283, 1.442695
    %v297 = vpow.pop %v296
    %v298 = vmul.f32 %v284, 1.442695
    %v299 = vpow.pop %v298
    %v300 = vmul.f32 %v285, 1.442695
    %v301 = vpow.pop %v300
    %v302 = vsel %vm101, %v287, 0.0
    %303 = vadd.xlane.f32.xlu0 %v302
    %v304 = vpop.xlane.xlu0 %303
    %v305 = vsel %vm101, %v289, 0.0
    %306 = vadd.xlane.f32.xlu0 %v305
    %v307 = vpop.xlane.xlu0 %306
    %v308 = vsel %vm101, %v291, 0.0
    %309 = vadd.xlane.f32.xlu0 %v308
    %v310 = vpop.xlane.xlu0 %309
    %v311 = vsel %vm101, %v293, 0.0
    %312 = vadd.xlane.f32.xlu0 %v311
    %v313 = vpop.xlane.xlu0 %312
    %v314 = vsel %vm101, %v295, 0.0
    %315 = vadd.xlane.f32.xlu0 %v314
    %v316 = vpop.xlane.xlu0 %315
    %v317 = vsel %vm101, %v297, 0.0
    %318 = vadd.xlane.f32.xlu0 %v317
    %v319 = vpop.xlane.xlu0 %318
    %v320 = vsel %vm101, %v299, 0.0
    %321 = vadd.xlane.f32.xlu0 %v320
    %v322 = vpop.xlane.xlu0 %321
    %v323 = vsel %vm101, %v301, 0.0
    %324 = vadd.xlane.f32.xlu0 %v323
    %v325 = vpop.xlane.xlu0 %324
    %v326 = vrcp.pop %v304
    %v327 = vrcp.pop %v307
    %v328 = vrcp.pop %v310
    %v329 = vrcp.pop %v313
    %v330 = vrcp.pop %v316
    %v331 = vrcp.pop %v319
    %v332 = vrcp.pop %v322
    %v333 = vrcp.pop %v325
    %v334 = vmul.f32 %v287, %v326
    %v335 = vmul.f32 %v289, %v327
    %v336 = vmul.f32 %v291, %v328
    %v337 = vmul.f32 %v293, %v329
    %v338 = vmul.f32 %v295, %v330
    %v339 = vmul.f32 %v297, %v331
    %v340 = vmul.f32 %v299, %v332
    %v341 = vmul.f32 %v301, %v333
    %v342 = vpack.c.bf16 %v334, %v334
    %v343 = vpack.c.bf16 %v335, %v335
    %v344 = vpack.c.bf16 %v336, %v336
    %v345 = vpack.c.bf16 %v337, %v337
    %v346 = vpack.c.bf16 %v338, %v338
    %v347 = vpack.c.bf16 %v339, %v339
    %v348 = vpack.c.bf16 %v340, %v340
    %v349 = vpack.c.bf16 %v341, %v341
    %v351 = vsel %vm101, %v342, 0
    %vm353 = vcmask 1043456
    %v354 = vsel %vm353, %v47, 0
    %356 = vmatpush.bf16.msra.mxu0 0
    %357 = vmatpush.bf16.msra.mxu0 0
    %358 = vmatpush.bf16.msra.mxu0 0
    %359 = vmatpush.bf16.msra.mxu0 0
    %360 = vmatpush.bf16.msra.mxu0 0
    %361 = vmatpush.bf16.msra.mxu0 0
    %362 = vmatpush.bf16.msra.mxu0 0
    %363 = vmatpush.bf16.msra.mxu0 %v354
    %364 = vmatmul.bf16.gmra.mxu0 %v351
    %v365 = vpop.f32.mrf.mxu0
    %v366 = vadd.f32 0.0, %v365
    %v367 = vpop.f32.mrf.mxu0
    %368 = vdwg.mxu0
    %v370 = vsel %vm101, %v343, 0
    %v372 = vsel %vm353, %v52, 0
    %374 = vmatpush.bf16.msra.mxu0 0
    %375 = vmatpush.bf16.msra.mxu0 0
    %376 = vmatpush.bf16.msra.mxu0 0
    %377 = vmatpush.bf16.msra.mxu0 0
    %378 = vmatpush.bf16.msra.mxu0 0
    %379 = vmatpush.bf16.msra.mxu0 0
    %380 = vmatpush.bf16.msra.mxu0 0
    %381 = vmatpush.bf16.msra.mxu0 %v372
    %382 = vmatmul.bf16.gmra.mxu0 %v370
    %v383 = vpop.f32.mrf.mxu0
    %v384 = vadd.f32 0.0, %v383
    %v385 = vpop.f32.mrf.mxu0
    %386 = vdwg.mxu0
    %v388 = vsel %vm101, %v344, 0
    %v390 = vsel %vm353, %v58, 0
    %392 = vmatpush.bf16.msra.mxu0 0
    %393 = vmatpush.bf16.msra.mxu0 0
    %394 = vmatpush.bf16.msra.mxu0 0
    %395 = vmatpush.bf16.msra.mxu0 0
    %396 = vmatpush.bf16.msra.mxu0 0
    %397 = vmatpush.bf16.msra.mxu0 0
    %398 = vmatpush.bf16.msra.mxu0 0
    %399 = vmatpush.bf16.msra.mxu0 %v390
    %400 = vmatmul.bf16.gmra.mxu0 %v388
    %v401 = vpop.f32.mrf.mxu0
    %v402 = vadd.f32 0.0, %v401
    %v403 = vpop.f32.mrf.mxu0
    %404 = vdwg.mxu0
    %v406 = vsel %vm101, %v345, 0
    %v408 = vsel %vm353, %v64, 0
    %410 = vmatpush.bf16.msra.mxu0 0
    %411 = vmatpush.bf16.msra.mxu0 0
    %412 = vmatpush.bf16.msra.mxu0 0
    %413 = vmatpush.bf16.msra.mxu0 0
    %414 = vmatpush.bf16.msra.mxu0 0
    %415 = vmatpush.bf16.msra.mxu0 0
    %416 = vmatpush.bf16.msra.mxu0 0
    %417 = vmatpush.bf16.msra.mxu0 %v408
    %418 = vmatmul.bf16.gmra.mxu0 %v406
    %v419 = vpop.f32.mrf.mxu0
    %v420 = vadd.f32 0.0, %v419
    %v421 = vpop.f32.mrf.mxu0
    %422 = vdwg.mxu0
    %v424 = vsel %vm101, %v346, 0
    %v426 = vsel %vm353, %v48, 0
    %428 = vmatpush.bf16.msra.mxu0 0
    %429 = vmatpush.bf16.msra.mxu0 0
    %430 = vmatpush.bf16.msra.mxu0 0
    %431 = vmatpush.bf16.msra.mxu0 0
    %432 = vmatpush.bf16.msra.mxu0 0
    %433 = vmatpush.bf16.msra.mxu0 0
    %434 = vmatpush.bf16.msra.mxu0 0
    %435 = vmatpush.bf16.msra.mxu0 %v426
    %436 = vmatmul.bf16.gmra.mxu0 %v424
    %v437 = vpop.f32.mrf.mxu0
    %v438 = vadd.f32 0.0, %v437
    %v439 = vpop.f32.mrf.mxu0
    %440 = vdwg.mxu0
    %v442 = vsel %vm101, %v347, 0
    %v444 = vsel %vm353, %v54, 0
    %446 = vmatpush.bf16.msra.mxu0 0
    %447 = vmatpush.bf16.msra.mxu0 0
    %448 = vmatpush.bf16.msra.mxu0 0
    %449 = vmatpush.bf16.msra.mxu0 0
    %450 = vmatpush.bf16.msra.mxu0 0
    %451 = vmatpush.bf16.msra.mxu0 0
    %452 = vmatpush.bf16.msra.mxu0 0
    %453 = vmatpush.bf16.msra.mxu0 %v444
    %454 = vmatmul.bf16.gmra.mxu0 %v442
    %v455 = vpop.f32.mrf.mxu0
    %v456 = vadd.f32 0.0, %v455
    %v457 = vpop.f32.mrf.mxu0
    %458 = vdwg.mxu0
    %v460 = vsel %vm101, %v348, 0
    %v462 = vsel %vm353, %v60, 0
    %464 = vmatpush.bf16.msra.mxu0 0
    %465 = vmatpush.bf16.msra.mxu0 0
    %466 = vmatpush.bf16.msra.mxu0 0
    %467 = vmatpush.bf16.msra.mxu0 0
    %468 = vmatpush.bf16.msra.mxu0 0
    %469 = vmatpush.bf16.msra.mxu0 0
    %470 = vmatpush.bf16.msra.mxu0 0
    %471 = vmatpush.bf16.msra.mxu0 %v462
    %472 = vmatmul.bf16.gmra.mxu0 %v460
    %v473 = vpop.f32.mrf.mxu0
    %v474 = vadd.f32 0.0, %v473
    %v475 = vpop.f32.mrf.mxu0
    %476 = vdwg.mxu0
    %v478 = vsel %vm101, %v349, 0
    %v480 = vsel %vm353, %v66, 0
    %482 = vmatpush.bf16.msra.mxu0 0
    %483 = vmatpush.bf16.msra.mxu0 0
    %484 = vmatpush.bf16.msra.mxu0 0
    %485 = vmatpush.bf16.msra.mxu0 0
    %486 = vmatpush.bf16.msra.mxu0 0
    %487 = vmatpush.bf16.msra.mxu0 0
    %488 = vmatpush.bf16.msra.mxu0 0
    %489 = vmatpush.bf16.msra.mxu0 %v480
    %490 = vmatmul.bf16.gmra.mxu0 %v478
    %v491 = vpop.f32.mrf.mxu0
    %v492 = vadd.f32 0.0, %v491
    %v493 = vpop.f32.mrf.mxu0
    %494 = vdwg.mxu0
    %495 = vst.msk [vmem:[#allocation7] sm:$0xff] %vm101, %v366
    %496 = vst.msk [vmem:[#allocation7 + $0x8] sm:$0xff] %vm101, %v438
    %499 = vrot.lane.b32.xlu0 %v384, 8
    %v500 = vpop.permute.xlu0 %499
    %501 = vrot.lane.b32.xlu0 %v456, 8
    %v502 = vpop.permute.xlu0 %501
    %vm505 = vcmask 130112
    %506 = vst.msk [vmem:[#allocation7] sm:$0xff] %vm505, %v500
    %507 = vst.msk [vmem:[#allocation7 + $0x8] sm:$0xff] %vm505, %v502
    %510 = vrot.lane.b32.xlu0 %v402, 16
    %v511 = vpop.permute.xlu0 %510
    %512 = vrot.lane.b32.xlu0 %v474, 16
    %v513 = vpop.permute.xlu0 %512
    %vm516 = vcmask 195712
    %517 = vst.msk [vmem:[#allocation7] sm:$0xff] %vm516, %v511
    %518 = vst.msk [vmem:[#allocation7 + $0x8] sm:$0xff] %vm516, %v513
    %521 = vrot.lane.b32.xlu0 %v420, 24
    %v522 = vpop.permute.xlu0 %521
    %523 = vrot.lane.b32.xlu0 %v492, 24
    %v524 = vpop.permute.xlu0 %523
    %vm527 = vcmask 261312
    %528 = vst.msk [vmem:[#allocation7] sm:$0xff] %vm527, %v522
    %529 = vst.msk [vmem:[#allocation7 + $0x8] sm:$0xff] %vm527, %v524
    // Predicated region
    $region18: #{tpu_custom_call.1} parent=1 // pred_check
      _
    $region19: #{tpu_custom_call.1} parent=1 // pred_check_branch
      %531 = sbr.rel (0) target = $region21
    $region20: #{tpu_custom_call.1} parent=1 // pred_region
      %533 = vsyncadd [#allocation4], 0
      %s534 = sshll.u32 [#allocation7], 4
      %s535 = int_to_ptr.vmem [resolvable:$true] %s534
      %s536 = sshll.u32 %s2, 4
      %s537 = int_to_ptr.hbm [resolvable:$true] %s536
      %542 = dma.vmem_to_hbm [thread:$0]  %s535, 256, %s537, [#allocation4], 128, 128, 8
    $region21: #{tpu_custom_call.1} parent=1 // pred_fallthru
      _
    // Predicated region
    $region22: #{tpu_custom_call.1} parent=1 // pred_check
      _
    $region23: #{tpu_custom_call.1} parent=1 // pred_check_branch
      %544 = sbr.rel (0) target = $region25
    $region24: #{tpu_custom_call.1} parent=1 // pred_region
      %546 = dma.done [#allocation4], 256
    $region25: #{tpu_custom_call.1} parent=1 // pred_fallthru
      _
    %547 = vsyncpa [#allocation3], 1
    %548 = vsyncpa [#allocation6], 1
    %549 = vsyncpa [#allocation4], 1

</llo_original>
